<compile_context>
chip_gen: v7x
topology: tpu7x:2x2x1
jax: 0.10.0
libtpu: 0.0.40
codegen_flags: <defaults>
</compile_context>

<pallas_src>
import jax
import jax.numpy as jnp
from jax.experimental import pallas as pl
from jax.experimental.pallas import tpu as pltpu


# ----------------------------------------------------------------------------
# Fused CALayer kernel. One grid step covers Nb batch elements.
# x / out block layout: (Nb, C, H*W)  -- native NCHW flattened over (H, W).
# ----------------------------------------------------------------------------
def _ca_kernel(x_ref, p_ref, w1s_ref, bnb_ref, wh_ref, ww_ref, eh_ref, ew_ref,
               o_ref):
    nb, c, hw = x_ref.shape
    cr = w1s_ref.shape[0]
    hdim = eh_ref.shape[0]                                     # H

    xall = x_ref[...].astype(jnp.float32)                      # (Nb, C, H*W)
    xf = xall.reshape(nb * c, hw)                              # batch the pooling matmul

    # Both poolings in one deep-K matmul (K = H*W):
    #   pooled[:, :H] = mean over W (H branch), pooled[:, H:] = mean over H (W branch).
    pooled = jnp.dot(xf, p_ref[...],
                     preferred_element_type=jnp.float32)       # (Nb*C, H+W)

    wh = wh_ref[...]                                           # (C, Cr)
    ww = ww_ref[...]                                           # (C, Cr)
    for b in range(nb):                                        # Nb small & static
        pb = pooled[b * c:(b + 1) * c, :]                      # (C, H+W)

        # conv_1x1 with eval-mode BN scale folded in, + bias, + ReLU.
        t = jnp.dot(w1s_ref[...], pb,
                    preferred_element_type=jnp.float32)        # (Cr, H+W)
        t = jnp.maximum(t + bnb_ref[...], 0.0)
        t_h = t[:, :hdim]                                      # (Cr, H)
        t_w = t[:, hdim:]                                      # (Cr, W)

        if cr <= 8:
            # rank-Cr VPU outer products; a K=Cr MXU matmul is pure latency.
            u_h = wh[:, 0:1] * t_h[0:1, :]
            u_w = ww[:, 0:1] * t_w[0:1, :]
            for r in range(1, cr):
                u_h = u_h + wh[:, r:r + 1] * t_h[r:r + 1, :]
                u_w = u_w + ww[:, r:r + 1] * t_w[r:r + 1, :]
        else:
            u_h = jnp.dot(wh, t_h, preferred_element_type=jnp.float32)
            u_w = jnp.dot(ww, t_w, preferred_element_type=jnp.float32)

        s_h = jax.nn.sigmoid(u_h)                              # (C, H)
        s_w = jax.nn.sigmoid(u_w)                              # (C, W)

        # Broadcast s_h over W and s_w over H without leaving the flat layout:
        # 0/1 expansion matmuls (each output column selects exactly one input).
        g_h = jnp.dot(s_h, eh_ref[...],
                      preferred_element_type=jnp.float32)      # (C, H*W)
        g_w = jnp.dot(s_w, ew_ref[...],
                      preferred_element_type=jnp.float32)      # (C, H*W)

        o_ref[b] = (xall[b] * g_h * g_w).astype(o_ref.dtype)


def _pick_block_n(n, per_elem_bytes, target_bytes=1 << 20):
    """Largest divisor of n with grid >= 2 (when n >= 2, for v7x's two TCs)
    and x-block size below target_bytes."""
    best = 1
    for nb in range(1, n + 1):
        if n % nb:
            continue
        if n >= 2 and (n // nb) < 2:
            continue
        if nb * per_elem_bytes > target_bytes:
            continue
        best = nb
    return best


# ----------------------------------------------------------------------------
# Public wrapper: NCHW in / NCHW out (PyTorch convention). Only free reshapes
# around the pallas_call; all weight packing is tiny constant glue.
# ----------------------------------------------------------------------------
def ca_layer_forward(x_nchw, params, eps=1e-5, target_block_bytes=1 << 20):
    N, C, H, W = x_nchw.shape
    HW = H * W
    f32 = jnp.float32

    w1 = params["w_1x1"][:, :, 0, 0].astype(f32)               # (Cr, C)
    wh = params["w_fh"][:, :, 0, 0].astype(f32)                # (C, Cr)
    ww = params["w_fw"][:, :, 0, 0].astype(f32)                # (C, Cr)
    Cr = w1.shape[0]

    # Eval-mode BatchNorm folded: scale into the conv weight, bias kept.
    bn_scale = params["bn_gamma"] / jnp.sqrt(params["bn_var"] + eps)   # (Cr,)
    bn_bias = params["bn_beta"] - params["bn_mean"] * bn_scale         # (Cr,)
    w1s = (w1 * bn_scale[:, None]).astype(f32)                         # (Cr, C)
    bnb = jnp.broadcast_to(bn_bias[:, None], (Cr, H + W)).astype(f32)

    # Constant pooling / broadcast-expansion matrices (tiny).
    h_of_p = jnp.arange(HW) // W
    w_of_p = jnp.arange(HW) % W
    P = jnp.concatenate([jax.nn.one_hot(h_of_p, H, dtype=f32) / W,
                         jax.nn.one_hot(w_of_p, W, dtype=f32) / H],
                        axis=1)                                        # (HW, H+W)
    Eh = jax.nn.one_hot(h_of_p, H, dtype=f32).T                        # (H, HW)
    Ew = jax.nn.one_hot(w_of_p, W, dtype=f32).T                        # (W, HW)

    # Free (metadata-only) reshape: NCHW -> (N, C, H*W). No HBM relayout.
    xf = x_nchw.reshape(N, C, HW)

    per_elem_bytes = C * HW * x_nchw.dtype.itemsize
    Nb = _pick_block_n(N, per_elem_bytes, target_block_bytes)
    grid = (N // Nb,)

    out_flat = pl.pallas_call(
        _ca_kernel,
        out_shape=jax.ShapeDtypeStruct((N, C, HW), x_nchw.dtype),
        grid=grid,
        in_specs=[
            pl.BlockSpec((Nb, C, HW), lambda n: (n, 0, 0)),    # x
            pl.BlockSpec((HW, H + W), lambda n: (0, 0)),       # P   (pooling)
            pl.BlockSpec((Cr, C), lambda n: (0, 0)),           # w1 * bn_scale
            pl.BlockSpec((Cr, H + W), lambda n: (0, 0)),       # bn bias
            pl.BlockSpec((C, Cr), lambda n: (0, 0)),           # F_h weight
            pl.BlockSpec((C, Cr), lambda n: (0, 0)),           # F_w weight
            pl.BlockSpec((H, HW), lambda n: (0, 0)),           # Eh (broadcast over W)
            pl.BlockSpec((W, HW), lambda n: (0, 0)),           # Ew (broadcast over H)
        ],
        out_specs=pl.BlockSpec((Nb, C, HW), lambda n: (n, 0, 0)),
        compiler_params=pltpu.CompilerParams(
            dimension_semantics=("parallel",),
            vmem_limit_bytes=32 * 1024 * 1024),
    )(xf, P, w1s, bnb, wh, ww, Eh, Ew)

    return out_flat.reshape(N, C, H, W)


# ----------------------------------------------------------------------------
# Pure-JAX reference (mirrors the PyTorch CALayer forward exactly, eval-mode BN).
# ----------------------------------------------------------------------------
def ref_forward(x, p, eps=1e-5):
    N, C, H, W = x.shape
    x_h = jnp.transpose(jnp.mean(x, axis=3, keepdims=True), (0, 1, 3, 2))  # (N,C,1,H)
    x_w = jnp.mean(x, axis=2, keepdims=True)                               # (N,C,1,W)
    cat = jnp.concatenate([x_h, x_w], axis=3)                              # (N,C,1,H+W)
    t = jnp.einsum("nchw,dc->ndhw", cat, p["w_1x1"][:, :, 0, 0])
    t = (t - p["bn_mean"][None, :, None, None]) / jnp.sqrt(
        p["bn_var"][None, :, None, None] + eps)
    t = t * p["bn_gamma"][None, :, None, None] + p["bn_beta"][None, :, None, None]
    t = jax.nn.relu(t)
    th = jnp.transpose(t[..., :H], (0, 1, 3, 2))                           # (N,Cr,H,1)
    tw = t[..., H:]                                                        # (N,Cr,1,W)
    s_h = jax.nn.sigmoid(jnp.einsum("ndhw,cd->nchw", th, p["w_fh"][:, :, 0, 0]))
    s_w = jax.nn.sigmoid(jnp.einsum("ndhw,cd->nchw", tw, p["w_fw"][:, :, 0, 0]))
    return x * s_h * s_w


if __name__ == "__main__":
    N, C, H, W = 2, 32, 16, 16          # channels >= reduction(16) so C//16 >= 1
    reduction = 16
    Cr = C // reduction

    key = jax.random.PRNGKey(0)
    ks = jax.random.split(key, 8)
    params = {
        "w_1x1":   jax.random.normal(ks[0], (Cr, C, 1, 1), jnp.float32) * 0.2,
        "w_fh":    jax.random.normal(ks[1], (C, Cr, 1, 1), jnp.float32) * 0.2,
        "w_fw":    jax.random.normal(ks[2], (C, Cr, 1, 1), jnp.float32) * 0.2,
        "bn_gamma": 1.0 + 0.1 * jax.random.normal(ks[3], (Cr,), jnp.float32),
        "bn_beta":  0.1 * jax.random.normal(ks[4], (Cr,), jnp.float32),
        "bn_mean":  0.1 * jax.random.normal(ks[5], (Cr,), jnp.float32),
        "bn_var":   jnp.abs(jax.random.normal(ks[6], (Cr,), jnp.float32)) + 0.5,
    }
    x = jax.random.normal(ks[7], (N, C, H, W), jnp.float32)

    out = jax.block_until_ready(ca_layer_forward(x, params))
    ref = jax.block_until_ready(ref_forward(x, params))

    assert out.shape == (N, C, H, W)
    err = jnp.max(jnp.abs(out - ref))
    assert jnp.allclose(out, ref, atol=2e-4, rtol=2e-4), f"max abs err {err}"
    print("KERNEL_OK")
</pallas_src>

<mosaic_0001>
module attributes {stable_mosaic.version = 11 : i64} {
  func.func @_ca_kernel(%arg0: i32, %arg1: memref<1x32x256xf32, #tpu.memory_space<vmem>>, %arg2: memref<256x32xf32, #tpu.memory_space<vmem>>, %arg3: memref<2x32xf32, #tpu.memory_space<vmem>>, %arg4: memref<2x32xf32, #tpu.memory_space<vmem>>, %arg5: memref<32x2xf32, #tpu.memory_space<vmem>>, %arg6: memref<32x2xf32, #tpu.memory_space<vmem>>, %arg7: memref<16x256xf32, #tpu.memory_space<vmem>>, %arg8: memref<16x256xf32, #tpu.memory_space<vmem>>, %arg9: memref<1x32x256xf32, #tpu.memory_space<vmem>>) attributes {dimension_semantics = [#tpu.dimension_semantics<parallel>], iteration_bounds = array<i64: 2>, scalar_prefetch = 0 : i64, scratch_operands = 0 : i64, tpu.core_type = #tpu.core_type<tc>, window_params = [{transform_indices = @transform_0, window_bounds = array<i64: 1, 32, 256>}, {pipeline_mode = #tpu.pipeline_mode<synchronous>, transform_indices = @transform_1, window_bounds = array<i64: 256, 32>}, {pipeline_mode = #tpu.pipeline_mode<synchronous>, transform_indices = @transform_2, window_bounds = array<i64: 2, 32>}, {pipeline_mode = #tpu.pipeline_mode<synchronous>, transform_indices = @transform_3, window_bounds = array<i64: 2, 32>}, {pipeline_mode = #tpu.pipeline_mode<synchronous>, transform_indices = @transform_4, window_bounds = array<i64: 32, 2>}, {pipeline_mode = #tpu.pipeline_mode<synchronous>, transform_indices = @transform_5, window_bounds = array<i64: 32, 2>}, {pipeline_mode = #tpu.pipeline_mode<synchronous>, transform_indices = @transform_6, window_bounds = array<i64: 16, 256>}, {pipeline_mode = #tpu.pipeline_mode<synchronous>, transform_indices = @transform_7, window_bounds = array<i64: 16, 256>}, {transform_indices = @transform_8, window_bounds = array<i64: 1, 32, 256>}]} {
    %c0 = arith.constant 0 : index
    %c0_0 = arith.constant 0 : index
    %c0_1 = arith.constant 0 : index
    %0 = vector.load %arg1[%c0, %c0_0, %c0_1] : memref<1x32x256xf32, #tpu.memory_space<vmem>>, vector<1x32x256xf32>
    %1 = vector.shape_cast %0 : vector<1x32x256xf32> to vector<32x256xf32>
    %c0_2 = arith.constant 0 : index
    %c0_3 = arith.constant 0 : index
    %2 = vector.load %arg2[%c0_2, %c0_3] : memref<256x32xf32, #tpu.memory_space<vmem>>, vector<256x32xf32>
    %cst = arith.constant dense<0.000000e+00> : vector<32x32xf32>
    %3 = tpu.matmul %1, %2, %cst {dimension_numbers = #tpu.dot_dimension_numbers<[1], [0], [0], [1], [0, 0, 1, 1], [], []>} : vector<32x256xf32>, vector<256x32xf32>, vector<32x32xf32> -> vector<32x32xf32>
    %c0_4 = arith.constant 0 : index
    %c0_5 = arith.constant 0 : index
    %4 = vector.load %arg5[%c0_4, %c0_5] : memref<32x2xf32, #tpu.memory_space<vmem>>, vector<32x2xf32>
    %c0_6 = arith.constant 0 : index
    %c0_7 = arith.constant 0 : index
    %5 = vector.load %arg6[%c0_6, %c0_7] : memref<32x2xf32, #tpu.memory_space<vmem>>, vector<32x2xf32>
    %c0_8 = arith.constant 0 : index
    %c0_9 = arith.constant 0 : index
    %6 = vector.load %arg3[%c0_8, %c0_9] : memref<2x32xf32, #tpu.memory_space<vmem>>, vector<2x32xf32>
    %cst_10 = arith.constant dense<0.000000e+00> : vector<2x32xf32>
    %7 = tpu.matmul %6, %3, %cst_10 {dimension_numbers = #tpu.dot_dimension_numbers<[1], [0], [0], [1], [0, 0, 1, 1], [], []>} : vector<2x32xf32>, vector<32x32xf32>, vector<2x32xf32> -> vector<2x32xf32>
    %c0_11 = arith.constant 0 : index
    %c0_12 = arith.constant 0 : index
    %8 = vector.load %arg4[%c0_11, %c0_12] : memref<2x32xf32, #tpu.memory_space<vmem>>, vector<2x32xf32>
    %9 = arith.addf %7, %8 : vector<2x32xf32>
    %cst_13 = arith.constant 0.000000e+00 : f32
    %10 = vector.broadcast %cst_13 : f32 to vector<2x32xf32>
    %11 = arith.maximumf %9, %10 : vector<2x32xf32>
    %12 = vector.extract_strided_slice %11 {offsets = [0, 0], sizes = [2, 16], strides = [1, 1]} : vector<2x32xf32> to vector<2x16xf32>
    %13 = vector.extract_strided_slice %11 {offsets = [0, 16], sizes = [2, 16], strides = [1, 1]} : vector<2x32xf32> to vector<2x16xf32>
    %14 = vector.extract_strided_slice %4 {offsets = [0, 0], sizes = [32, 1], strides = [1, 1]} : vector<32x2xf32> to vector<32x1xf32>
    %15 = vector.extract_strided_slice %12 {offsets = [0, 0], sizes = [1, 16], strides = [1, 1]} : vector<2x16xf32> to vector<1x16xf32>
    %16 = vector.broadcast %14 : vector<32x1xf32> to vector<32x16xf32>
    %17 = vector.broadcast %15 : vector<1x16xf32> to vector<32x16xf32>
    %18 = arith.mulf %16, %17 : vector<32x16xf32>
    %19 = vector.extract_strided_slice %5 {offsets = [0, 0], sizes = [32, 1], strides = [1, 1]} : vector<32x2xf32> to vector<32x1xf32>
    %20 = vector.extract_strided_slice %13 {offsets = [0, 0], sizes = [1, 16], strides = [1, 1]} : vector<2x16xf32> to vector<1x16xf32>
    %21 = vector.broadcast %19 : vector<32x1xf32> to vector<32x16xf32>
    %22 = vector.broadcast %20 : vector<1x16xf32> to vector<32x16xf32>
    %23 = arith.mulf %21, %22 : vector<32x16xf32>
    %24 = vector.extract_strided_slice %4 {offsets = [0, 1], sizes = [32, 1], strides = [1, 1]} : vector<32x2xf32> to vector<32x1xf32>
    %25 = vector.extract_strided_slice %12 {offsets = [1, 0], sizes = [1, 16], strides = [1, 1]} : vector<2x16xf32> to vector<1x16xf32>
    %26 = vector.broadcast %24 : vector<32x1xf32> to vector<32x16xf32>
    %27 = vector.broadcast %25 : vector<1x16xf32> to vector<32x16xf32>
    %28 = arith.mulf %26, %27 : vector<32x16xf32>
    %29 = arith.addf %18, %28 : vector<32x16xf32>
    %30 = vector.extract_strided_slice %5 {offsets = [0, 1], sizes = [32, 1], strides = [1, 1]} : vector<32x2xf32> to vector<32x1xf32>
    %31 = vector.extract_strided_slice %13 {offsets = [1, 0], sizes = [1, 16], strides = [1, 1]} : vector<2x16xf32> to vector<1x16xf32>
    %32 = vector.broadcast %30 : vector<32x1xf32> to vector<32x16xf32>
    %33 = vector.broadcast %31 : vector<1x16xf32> to vector<32x16xf32>
    %34 = arith.mulf %32, %33 : vector<32x16xf32>
    %35 = arith.addf %23, %34 : vector<32x16xf32>
    %36 = arith.negf %29 : vector<32x16xf32>
    %37 = math.exp %36 : vector<32x16xf32>
    %cst_14 = arith.constant 1.000000e+00 : f32
    %38 = vector.broadcast %cst_14 : f32 to vector<32x16xf32>
    %39 = arith.addf %38, %37 : vector<32x16xf32>
    %40 = arith.divf %38, %39 : vector<32x16xf32>
    %41 = arith.negf %35 : vector<32x16xf32>
    %42 = math.exp %41 : vector<32x16xf32>
    %cst_15 = arith.constant 1.000000e+00 : f32
    %43 = vector.broadcast %cst_15 : f32 to vector<32x16xf32>
    %44 = arith.addf %43, %42 : vector<32x16xf32>
    %45 = arith.divf %43, %44 : vector<32x16xf32>
    %c0_16 = arith.constant 0 : index
    %c0_17 = arith.constant 0 : index
    %46 = vector.load %arg7[%c0_16, %c0_17] : memref<16x256xf32, #tpu.memory_space<vmem>>, vector<16x256xf32>
    %cst_18 = arith.constant dense<0.000000e+00> : vector<32x256xf32>
    %47 = tpu.matmul %40, %46, %cst_18 {dimension_numbers = #tpu.dot_dimension_numbers<[1], [0], [0], [1], [0, 0, 1, 1], [], []>} : vector<32x16xf32>, vector<16x256xf32>, vector<32x256xf32> -> vector<32x256xf32>
    %c0_19 = arith.constant 0 : index
    %c0_20 = arith.constant 0 : index
    %48 = vector.load %arg8[%c0_19, %c0_20] : memref<16x256xf32, #tpu.memory_space<vmem>>, vector<16x256xf32>
    %cst_21 = arith.constant dense<0.000000e+00> : vector<32x256xf32>
    %49 = tpu.matmul %45, %48, %cst_21 {dimension_numbers = #tpu.dot_dimension_numbers<[1], [0], [0], [1], [0, 0, 1, 1], [], []>} : vector<32x16xf32>, vector<16x256xf32>, vector<32x256xf32> -> vector<32x256xf32>
    %50 = vector.shape_cast %0 : vector<1x32x256xf32> to vector<32x256xf32>
    %51 = arith.mulf %50, %47 : vector<32x256xf32>
    %52 = arith.mulf %51, %49 : vector<32x256xf32>
    %c0_22 = arith.constant 0 : index
    %c0_23 = arith.constant 0 : index
    %c0_24 = arith.constant 0 : index
    %53 = vector.load %arg9[%c0_22, %c0_23, %c0_24] : memref<1x32x256xf32, #tpu.memory_space<vmem>>, vector<1x32x256xf32>
    %54 = vector.shape_cast %53 : vector<1x32x256xf32> to vector<32x256xf32>
    %55 = vector.shape_cast %52 : vector<32x256xf32> to vector<1x32x256xf32>
    tpu.vector_store %arg9[%c0_22, %c0_23, %c0_24], %55 {strides = array<i32>} : memref<1x32x256xf32, #tpu.memory_space<vmem>>, vector<1x32x256xf32>,
    return
  }
  func.func @transform_0(%arg0: i32) -> (i32, i32, i32) {
    %c0_i32 = arith.constant 0 : i32
    %c0_i32_0 = arith.constant 0 : i32
    %c0_i32_1 = arith.constant 0 : i32
    return %arg0, %c0_i32, %c0_i32_0 : i32, i32, i32
  }
  func.func @transform_1(%arg0: i32) -> (i32, i32) {
    %c0_i32 = arith.constant 0 : i32
    %c0_i32_0 = arith.constant 0 : i32
    %c0_i32_1 = arith.constant 0 : i32
    return %c0_i32, %c0_i32_0 : i32, i32
  }
  func.func @transform_2(%arg0: i32) -> (i32, i32) {
    %c0_i32 = arith.constant 0 : i32
    %c0_i32_0 = arith.constant 0 : i32
    %c0_i32_1 = arith.constant 0 : i32
    return %c0_i32, %c0_i32_0 : i32, i32
  }
  func.func @transform_3(%arg0: i32) -> (i32, i32) {
    %c0_i32 = arith.constant 0 : i32
    %c0_i32_0 = arith.constant 0 : i32
    %c0_i32_1 = arith.constant 0 : i32
    return %c0_i32, %c0_i32_0 : i32, i32
  }
  func.func @transform_4(%arg0: i32) -> (i32, i32) {
    %c0_i32 = arith.constant 0 : i32
    %c0_i32_0 = arith.constant 0 : i32
    %c0_i32_1 = arith.constant 0 : i32
    return %c0_i32, %c0_i32_0 : i32, i32
  }
  func.func @transform_5(%arg0: i32) -> (i32, i32) {
    %c0_i32 = arith.constant 0 : i32
    %c0_i32_0 = arith.constant 0 : i32
    %c0_i32_1 = arith.constant 0 : i32
    return %c0_i32, %c0_i32_0 : i32, i32
  }
  func.func @transform_6(%arg0: i32) -> (i32, i32) {
    %c0_i32 = arith.constant 0 : i32
    %c0_i32_0 = arith.constant 0 : i32
    %c0_i32_1 = arith.constant 0 : i32
    return %c0_i32, %c0_i32_0 : i32, i32
  }
  func.func @transform_7(%arg0: i32) -> (i32, i32) {
    %c0_i32 = arith.constant 0 : i32
    %c0_i32_0 = arith.constant 0 : i32
    %c0_i32_1 = arith.constant 0 : i32
    return %c0_i32, %c0_i32_0 : i32, i32
  }
  func.func @transform_8(%arg0: i32) -> (i32, i32, i32) {
    %c0_i32 = arith.constant 0 : i32
    %c0_i32_0 = arith.constant 0 : i32
    %c0_i32_1 = arith.constant 0 : i32
    return %arg0, %c0_i32, %c0_i32_0 : i32, i32, i32
  }
}

</mosaic_0001>

<llo_original>
// kernel: tpu_custom_call.1
$region0: #{tpu_custom_call.1}
  #allocation0 [shape = 'u32[]', space=smem, size = 0x4, offset = 0x4, fixed_abs, tag = 'smem constant byte address 0x4 - core index']
  #allocation1 [shape = 'u32[144,128]{1,0:T(1,128)}', space=vmem, size = 0x12000, scoped, tag = 'internal scratch']
  %s0 = inlined_call_operand.vmem [shape: f32[2,32,256], index: 0, kind: input, shape index: {}]
  %s1 = inlined_call_operand.vmem [shape: f32[256,32], index: 1, kind: input, shape index: {}]
  %s2 = inlined_call_operand.vmem [shape: f32[2,32], index: 2, kind: input, shape index: {}]
  %s3 = inlined_call_operand.vmem [shape: f32[2,32], index: 3, kind: input, shape index: {}]
  %s4 = inlined_call_operand.vmem [shape: f32[32,2], index: 4, kind: input, shape index: {}]
  %s5 = inlined_call_operand.vmem [shape: f32[32,2], index: 5, kind: input, shape index: {}]
  %s6 = inlined_call_operand.vmem [shape: f32[16,256], index: 6, kind: input, shape index: {}]
  %s7 = inlined_call_operand.vmem [shape: f32[16,256], index: 7, kind: input, shape index: {}]
  %s8 = inlined_call_operand.hbm [shape: f32[2,32,256], index: 8, kind: output, shape index: {}]
  %s9 = sld [smem:[#allocation0]]
  $region65: #{tpu_custom_call.1} parent=0
    _
  %s11 = ssub.s32 1, %s9
  %s12 = scalar_select 0, %s11, %s9
  $region1: #{tpu_custom_call.1} parent=0
    #allocation2 [shape = 'u8[65536]{0}', space=vmem, size = 0x10000, scoped, tag = 'output window, operand 0']
    #allocation3 [shape = 's32[2]{0}', space=sflag, size = 0x8, scoped, tag = 'scoped memory for tpu_custom_call.1']
    %13 = vsyncpa [#allocation3], 0
    %s14 = scalar_lea.sflag [#allocation3], 1
    %15 = vsyncpa %s14, 0
    loop: start=0, step=1, limit=4
    $region2: #{tpu_custom_call.1} parent=1 // loop_pre_header
      _
    $region3: #{tpu_custom_call.1} parent=1 // loop_header
      %s17 = sphi 0, %s21
      %p18 = scmp.ge.s32.totalorder %s17, 4
      %s27 = sphi 0, %s29
      %s30 = sphi 0, %s27
      %s31 = sphi 0, %s30
      %s47 = sphi 0, %s31
      %s51 = sphi 0, %s51
      %s53 = sphi 0, %s51
      %s54 = sphi 0, %s53
      %s68 = sphi 0, %s54
      %s72 = sphi 0, %s72
      %s74 = sphi 0, %s72
      %s75 = sphi 0, %s74
      %s89 = sphi 0, %s75
      %s93 = sphi 0, %s93
      %s95 = sphi 0, %s93
      %s96 = sphi 0, %s95
      %s110 = sphi 0, %s96
      %s114 = sphi 0, %s114
      %s116 = sphi 0, %s114
      %s117 = sphi 0, %s116
      %s131 = sphi 0, %s117
      %s135 = sphi 0, %s135
      %s137 = sphi 0, %s135
      %s138 = sphi 0, %s137
      %s152 = sphi 0, %s138
      %s156 = sphi 0, %s156
      %s158 = sphi 0, %s156
      %s159 = sphi 0, %s158
      %s173 = sphi 0, %s159
      %s177 = sphi 0, %s177
      %s179 = sphi 0, %s177
      %s180 = sphi 0, %s179
      %s194 = sphi 0, %s180
      %s200 = sphi 0, %s202
      %s203 = sphi 0, %s200
      %s204 = sphi 0, %s203
      %s220 = sphi 0, %s204
    $region4: #{tpu_custom_call.1} parent=1 // loop_header_branch
      %20 = sbr.rel (%p18) target = $region8
    $region5: #{tpu_custom_call.1} parent=1 // loop_body
      %s22 = ssub.s32 %s17, 1
      %s23 = ssub.s32 %s17, 2
      %s24 = sadd.s32 %s17, 1
      %s25 = ssub.s32 %s17, %s24
      %p26 = scmp.eq.s32.totalorder %s25, 0
      %s28 = sadd.s32 %s27, 1
      %s29 = scalar_select %p26, %s27, %s28
      %p32 = pneg %p26
      %p33 = scmp.eq.s32.totalorder %s17, 1
      %p34 = por %p32, %p33
      %p35 = scmp.ne.s32.totalorder %s27, %s30
      %p36 = scmp.eq.s32.totalorder %s17, 0
      %p37 = por %p35, %p36
      %p38 = scmp.ne.s32.totalorder %s27, %s30
      %p39 = scmp.eq.s32.totalorder %s22, 1
      %p40 = por %p38, %p39
      %p41 = scmp.ne.s32.totalorder %s30, %s31
      %p42 = scmp.eq.s32.totalorder %s22, 0
      %p43 = por %p41, %p42
      %p44 = scmp.ne.s32.totalorder %s30, %s31
      %p45 = scmp.eq.s32.totalorder %s23, 1
      %p46 = por %p44, %p45
      %p48 = scmp.ne.s32.totalorder %s31, %s47
      %p49 = scmp.eq.s32.totalorder %s23, 0
      %p50 = por %p48, %p49
      %s52 = sadd.s32 %s51, 1
      %p55 = scmp.eq.s32.totalorder %s17, 1
      %p56 = scmp.ne.s32.totalorder %s51, %s53
      %p57 = scmp.eq.s32.totalorder %s17, 0
      %p58 = por %p56, %p57
      %p59 = scmp.ne.s32.totalorder %s51, %s53
      %p60 = scmp.eq.s32.totalorder %s22, 1
      %p61 = por %p59, %p60
      %p62 = scmp.ne.s32.totalorder %s53, %s54
      %p63 = scmp.eq.s32.totalorder %s22, 0
      %p64 = por %p62, %p63
      %p65 = scmp.ne.s32.totalorder %s53, %s54
      %p66 = scmp.eq.s32.totalorder %s23, 1
      %p67 = por %p65, %p66
      %p69 = scmp.ne.s32.totalorder %s54, %s68
      %p70 = scmp.eq.s32.totalorder %s23, 0
      %p71 = por %p69, %p70
      %s73 = sadd.s32 %s72, 1
      %p76 = scmp.eq.s32.totalorder %s17, 1
      %p77 = scmp.ne.s32.totalorder %s72, %s74
      %p78 = scmp.eq.s32.totalorder %s17, 0
      %p79 = por %p77, %p78
      %p80 = scmp.ne.s32.totalorder %s72, %s74
      %p81 = scmp.eq.s32.totalorder %s22, 1
      %p82 = por %p80, %p81
      %p83 = scmp.ne.s32.totalorder %s74, %s75
      %p84 = scmp.eq.s32.totalorder %s22, 0
      %p85 = por %p83, %p84
      %p86 = scmp.ne.s32.totalorder %s74, %s75
      %p87 = scmp.eq.s32.totalorder %s23, 1
      %p88 = por %p86, %p87
      %p90 = scmp.ne.s32.totalorder %s75, %s89
      %p91 = scmp.eq.s32.totalorder %s23, 0
      %p92 = por %p90, %p91
      %s94 = sadd.s32 %s93, 1
      %p97 = scmp.eq.s32.totalorder %s17, 1
      %p98 = scmp.ne.s32.totalorder %s93, %s95
      %p99 = scmp.eq.s32.totalorder %s17, 0
      %p100 = por %p98, %p99
      %p101 = scmp.ne.s32.totalorder %s93, %s95
      %p102 = scmp.eq.s32.totalorder %s22, 1
      %p103 = por %p101, %p102
      %p104 = scmp.ne.s32.totalorder %s95, %s96
      %p105 = scmp.eq.s32.totalorder %s22, 0
      %p106 = por %p104, %p105
      %p107 = scmp.ne.s32.totalorder %s95, %s96
      %p108 = scmp.eq.s32.totalorder %s23, 1
      %p109 = por %p107, %p108
      %p111 = scmp.ne.s32.totalorder %s96, %s110
      %p112 = scmp.eq.s32.totalorder %s23, 0
      %p113 = por %p111, %p112
      %s115 = sadd.s32 %s114, 1
      %p118 = scmp.eq.s32.totalorder %s17, 1
      %p119 = scmp.ne.s32.totalorder %s114, %s116
      %p120 = scmp.eq.s32.totalorder %s17, 0
      %p121 = por %p119, %p120
      %p122 = scmp.ne.s32.totalorder %s114, %s116
      %p123 = scmp.eq.s32.totalorder %s22, 1
      %p124 = por %p122, %p123
      %p125 = scmp.ne.s32.totalorder %s116, %s117
      %p126 = scmp.eq.s32.totalorder %s22, 0
      %p127 = por %p125, %p126
      %p128 = scmp.ne.s32.totalorder %s116, %s117
      %p129 = scmp.eq.s32.totalorder %s23, 1
      %p130 = por %p128, %p129
      %p132 = scmp.ne.s32.totalorder %s117, %s131
      %p133 = scmp.eq.s32.totalorder %s23, 0
      %p134 = por %p132, %p133
      %s136 = sadd.s32 %s135, 1
      %p139 = scmp.eq.s32.totalorder %s17, 1
      %p140 = scmp.ne.s32.totalorder %s135, %s137
      %p141 = scmp.eq.s32.totalorder %s17, 0
      %p142 = por %p140, %p141
      %p143 = scmp.ne.s32.totalorder %s135, %s137
      %p144 = scmp.eq.s32.totalorder %s22, 1
      %p145 = por %p143, %p144
      %p146 = scmp.ne.s32.totalorder %s137, %s138
      %p147 = scmp.eq.s32.totalorder %s22, 0
      %p148 = por %p146, %p147
      %p149 = scmp.ne.s32.totalorder %s137, %s138
      %p150 = scmp.eq.s32.totalorder %s23, 1
      %p151 = por %p149, %p150
      %p153 = scmp.ne.s32.totalorder %s138, %s152
      %p154 = scmp.eq.s32.totalorder %s23, 0
      %p155 = por %p153, %p154
      %s157 = sadd.s32 %s156, 1
      %p160 = scmp.eq.s32.totalorder %s17, 1
      %p161 = scmp.ne.s32.totalorder %s156, %s158
      %p162 = scmp.eq.s32.totalorder %s17, 0
      %p163 = por %p161, %p162
      %p164 = scmp.ne.s32.totalorder %s156, %s158
      %p165 = scmp.eq.s32.totalorder %s22, 1
      %p166 = por %p164, %p165
      %p167 = scmp.ne.s32.totalorder %s158, %s159
      %p168 = scmp.eq.s32.totalorder %s22, 0
      %p169 = por %p167, %p168
      %p170 = scmp.ne.s32.totalorder %s158, %s159
      %p171 = scmp.eq.s32.totalorder %s23, 1
      %p172 = por %p170, %p171
      %p174 = scmp.ne.s32.totalorder %s159, %s173
      %p175 = scmp.eq.s32.totalorder %s23, 0
      %p176 = por %p174, %p175
      %s178 = sadd.s32 %s177, 1
      %p181 = scmp.eq.s32.totalorder %s17, 1
      %p182 = scmp.ne.s32.totalorder %s177, %s179
      %p183 = scmp.eq.s32.totalorder %s17, 0
      %p184 = por %p182, %p183
      %p185 = scmp.ne.s32.totalorder %s177, %s179
      %p186 = scmp.eq.s32.totalorder %s22, 1
      %p187 = por %p185, %p186
      %p188 = scmp.ne.s32.totalorder %s179, %s180
      %p189 = scmp.eq.s32.totalorder %s22, 0
      %p190 = por %p188, %p189
      %p191 = scmp.ne.s32.totalorder %s179, %s180
      %p192 = scmp.eq.s32.totalorder %s23, 1
      %p193 = por %p191, %p192
      %p195 = scmp.ne.s32.totalorder %s180, %s194
      %p196 = scmp.eq.s32.totalorder %s23, 0
      %p197 = por %p195, %p196
      %s198 = ssub.s32 %s17, %s24
      %p199 = scmp.eq.s32.totalorder %s198, 0
      %s201 = sadd.s32 %s200, 1
      %s202 = scalar_select %p199, %s200, %s201
      %p205 = pneg %p199
      %p206 = scmp.eq.s32.totalorder %s17, 1
      %p207 = por %p205, %p206
      %p208 = scmp.ne.s32.totalorder %s200, %s203
      %p209 = scmp.eq.s32.totalorder %s17, 0
      %p210 = por %p208, %p209
      %p211 = scmp.ne.s32.totalorder %s200, %s203
      %p212 = scmp.eq.s32.totalorder %s22, 1
      %p213 = por %p211, %p212
      %p214 = scmp.ne.s32.totalorder %s203, %s204
      %p215 = scmp.eq.s32.totalorder %s22, 0
      %p216 = por %p214, %p215
      %p217 = scmp.ne.s32.totalorder %s203, %s204
      %p218 = scmp.eq.s32.totalorder %s23, 1
      %p219 = por %p217, %p218
      %p221 = scmp.ne.s32.totalorder %s204, %s220
      %p222 = scmp.eq.s32.totalorder %s23, 0
      %p223 = por %p221, %p222
      %p224 = scmp.le.s32.totalorder 1, %s17
      %p225 = scmp.lt.s32.totalorder %s17, 3
      %p226 = pnand %p224, %p225
      %p227 = pneg %p226
      // Predicated region
      $region9: #{tpu_custom_call.1} parent=5 // pred_check
        _
      $region10: #{tpu_custom_call.1} parent=5 // pred_check_branch
        %229 = sbr.rel (%p226) target = $region12
      $region11: #{tpu_custom_call.1} parent=5 // pred_region
        %s230 = ssub.s32 %s17, 1
        // Predicated region
        $region13: #{tpu_custom_call.1} parent=11 // pred_check
          %p231 = pneg %p64
        $region14: #{tpu_custom_call.1} parent=11 // pred_check_branch
          %233 = sbr.rel (%p231) target = $region16
        $region15: #{tpu_custom_call.1} parent=11 // pred_region
          _
        $region16: #{tpu_custom_call.1} parent=11 // pred_fallthru
          _
        // Predicated region
        $region17: #{tpu_custom_call.1} parent=11 // pred_check
          %p234 = pneg %p85
        $region18: #{tpu_custom_call.1} parent=11 // pred_check_branch
          %236 = sbr.rel (%p234) target = $region20
        $region19: #{tpu_custom_call.1} parent=11 // pred_region
          _
        $region20: #{tpu_custom_call.1} parent=11 // pred_fallthru
          _
        // Predicated region
        $region21: #{tpu_custom_call.1} parent=11 // pred_check
          %p237 = pneg %p106
        $region22: #{tpu_custom_call.1} parent=11 // pred_check_branch
          %239 = sbr.rel (%p237) target = $region24
        $region23: #{tpu_custom_call.1} parent=11 // pred_region
          _
        $region24: #{tpu_custom_call.1} parent=11 // pred_fallthru
          _
        // Predicated region
        $region25: #{tpu_custom_call.1} parent=11 // pred_check
          %p240 = pneg %p127
        $region26: #{tpu_custom_call.1} parent=11 // pred_check_branch
          %242 = sbr.rel (%p240) target = $region28
        $region27: #{tpu_custom_call.1} parent=11 // pred_region
          _
        $region28: #{tpu_custom_call.1} parent=11 // pred_fallthru
          _
        // Predicated region
        $region29: #{tpu_custom_call.1} parent=11 // pred_check
          %p243 = pneg %p148
        $region30: #{tpu_custom_call.1} parent=11 // pred_check_branch
          %245 = sbr.rel (%p243) target = $region32
        $region31: #{tpu_custom_call.1} parent=11 // pred_region
          _
        $region32: #{tpu_custom_call.1} parent=11 // pred_fallthru
          _
        // Predicated region
        $region33: #{tpu_custom_call.1} parent=11 // pred_check
          %p246 = pneg %p169
        $region34: #{tpu_custom_call.1} parent=11 // pred_check_branch
          %248 = sbr.rel (%p246) target = $region36
        $region35: #{tpu_custom_call.1} parent=11 // pred_region
          _
        $region36: #{tpu_custom_call.1} parent=11 // pred_fallthru
          _
        // Predicated region
        $region37: #{tpu_custom_call.1} parent=11 // pred_check
          %p249 = pneg %p190
        $region38: #{tpu_custom_call.1} parent=11 // pred_check_branch
          %251 = sbr.rel (%p249) target = $region40
        $region39: #{tpu_custom_call.1} parent=11 // pred_region
          _
        $region40: #{tpu_custom_call.1} parent=11 // pred_fallthru
          _
      $region12: #{tpu_custom_call.1} parent=5 // pred_fallthru
        _
      %p252 = scmp.lt.s32.totalorder %s17, 2
      // Predicated region
      $region41: #{tpu_custom_call.1} parent=5 // pred_check
        %p253 = pneg %p252
      $region42: #{tpu_custom_call.1} parent=5 // pred_check_branch
        %255 = sbr.rel (%p253) target = $region44
      $region43: #{tpu_custom_call.1} parent=5 // pred_region
        // Predicated region
        $region45: #{tpu_custom_call.1} parent=43 // pred_check
          %p256 = pneg %p37
        $region46: #{tpu_custom_call.1} parent=43 // pred_check_branch
          %258 = sbr.rel (%p256) target = $region48
        $region47: #{tpu_custom_call.1} parent=43 // pred_region
          %p259 = scmp.lt.s32.totalorder %s17, 1
          %s260 = scalar_select %p259, %s17, 1
          %s261 = smul.addr %s260, 8
          %s262 = smul.addr %s261, 8
          %s263 = scalar_lea.vmem %s0, %s262
        $region48: #{tpu_custom_call.1} parent=43 // pred_fallthru
          _
      $region44: #{tpu_custom_call.1} parent=5 // pred_fallthru
        _
      %p264 = scmp.le.s32.totalorder 1, %s17
      %p265 = scmp.lt.s32.totalorder %s17, 3
      %p266 = pnand %p264, %p265
      %p267 = pneg %p266
      // Predicated region
      $region49: #{tpu_custom_call.1} parent=5 // pred_check
        _
      $region50: #{tpu_custom_call.1} parent=5 // pred_check_branch
        %269 = sbr.rel (%p266) target = $region52
      $region51: #{tpu_custom_call.1} parent=5 // pred_region
        %s270 = ssub.s32 %s17, 1
        %p271 = scmp.lt.s32.totalorder %s22, 1
        %s272 = scalar_select %p271, %s22, 1
        %s273 = smul.addr %s272, 8
        %s274 = smul.addr %s273, 8
        %s275 = scalar_lea.vmem %s0, %s274
        %p276 = pneg %p43
        %p277 = pneg %p40
        %p278 = pneg %p64
        %p279 = pneg %p61
        %p280 = pneg %p85
        %p281 = pneg %p82
        %p282 = pneg %p106
        %p283 = pneg %p103
        %p284 = pneg %p127
        %p285 = pneg %p124
        %p286 = pneg %p148
        %p287 = pneg %p145
        %p288 = pneg %p169
        %p289 = pneg %p166
        %p290 = pneg %p190
        %p291 = pneg %p187
        %p292 = pneg %p216
        %p293 = pneg %p213
        %s294 = sand.u32 %s203, 1
        %s295 = scalar_lea.sflag [#allocation3], %s294
        %s296 = sand.u32 %s203, 1
        %s297 = smul.addr %s296, 64
        %s298 = scalar_lea.vmem [#allocation2], %s297
        %p299 = scmp.lt.s32.totalorder %s22, 1
        %s300 = scalar_select %p299, %s22, 1
        %s301 = smul.addr %s300, 8
        %s302 = smul.addr %s301, 8
        %s303 = scalar_lea.vmem %s0, %s302
        %v304 = vld [vmem:[%s303] sm:$0xff]
        %v305 = vld [vmem:[%s303 + $0x8] sm:$0xff]
        %v306 = vld [vmem:[%s303 + $0x10] sm:$0xff]
        %v307 = vld [vmem:[%s303 + $0x18] sm:$0xff]
        %v308 = vld [vmem:[%s303 + $0x20] sm:$0xff]
        %v309 = vld [vmem:[%s303 + $0x28] sm:$0xff]
        %v310 = vld [vmem:[%s303 + $0x30] sm:$0xff]
        %v311 = vld [vmem:[%s303 + $0x38] sm:$0xff]
        %v312 = vld [vmem:[%s1] sm:$0xff]
        %v313 = vld [vmem:[%s1 + $0x8] sm:$0xff]
        %v314 = vld [vmem:[%s1 + $0x10] sm:$0xff]
        %v315 = vld [vmem:[%s1 + $0x18] sm:$0xff]
        %v316 = vld [vmem:[%s1 + $0x20] sm:$0xff]
        %v317 = vld [vmem:[%s1 + $0x28] sm:$0xff]
        %v318 = vld [vmem:[%s1 + $0x30] sm:$0xff]
        %v319 = vld [vmem:[%s1 + $0x38] sm:$0xff]
        %v320 = vld [vmem:[%s1 + $0x40] sm:$0xff]
        %v321 = vld [vmem:[%s1 + $0x48] sm:$0xff]
        %v322 = vld [vmem:[%s1 + $0x50] sm:$0xff]
        %v323 = vld [vmem:[%s1 + $0x58] sm:$0xff]
        %v324 = vld [vmem:[%s1 + $0x60] sm:$0xff]
        %v325 = vld [vmem:[%s1 + $0x68] sm:$0xff]
        %v326 = vld [vmem:[%s1 + $0x70] sm:$0xff]
        %v327 = vld [vmem:[%s1 + $0x78] sm:$0xff]
        %v328 = vld [vmem:[%s1 + $0x80] sm:$0xff]
        %v329 = vld [vmem:[%s1 + $0x88] sm:$0xff]
        %v330 = vld [vmem:[%s1 + $0x90] sm:$0xff]
        %v331 = vld [vmem:[%s1 + $0x98] sm:$0xff]
        %v332 = vld [vmem:[%s1 + $0xa0] sm:$0xff]
        %v333 = vld [vmem:[%s1 + $0xa8] sm:$0xff]
        %v334 = vld [vmem:[%s1 + $0xb0] sm:$0xff]
        %v335 = vld [vmem:[%s1 + $0xb8] sm:$0xff]
        %v336 = vld [vmem:[%s1 + $0xc0] sm:$0xff]
        %v337 = vld [vmem:[%s1 + $0xc8] sm:$0xff]
        %v338 = vld [vmem:[%s1 + $0xd0] sm:$0xff]
        %v339 = vld [vmem:[%s1 + $0xd8] sm:$0xff]
        %v340 = vld [vmem:[%s1 + $0xe0] sm:$0xff]
        %v341 = vld [vmem:[%s1 + $0xe8] sm:$0xff]
        %v342 = vld [vmem:[%s1 + $0xf0] sm:$0xff]
        %v343 = vld [vmem:[%s1 + $0xf8] sm:$0xff]
        %344 = vmatprep.subr.mxu0 0.0
        %345 = vmatpush1.msra.mxu0 %v312
        %346 = vmatprep.subr.mxu0 0.0
        %347 = vmatpush1.msra.mxu0 %v313
        %348 = vmatprep.subr.mxu0 0.0
        %349 = vmatpush1.msra.mxu0 %v314
        %350 = vmatprep.subr.mxu0 0.0
        %351 = vmatpush1.msra.mxu0 %v315
        %352 = vmatprep.subr.mxu0 0.0
        %353 = vmatpush1.msra.mxu0 %v316
        %354 = vmatprep.subr.mxu0 0.0
        %355 = vmatpush1.msra.mxu0 %v317
        %356 = vmatprep.subr.mxu0 0.0
        %357 = vmatpush1.msra.mxu0 %v318
        %358 = vmatprep.subr.mxu0 0.0
        %359 = vmatpush1.msra.mxu0 %v319
        %360 = vmatprep.subr.mxu0 0.0
        %361 = vmatpush1.msra.mxu0 %v320
        %362 = vmatprep.subr.mxu0 0.0
        %363 = vmatpush1.msra.mxu0 %v321
        %364 = vmatprep.subr.mxu0 0.0
        %365 = vmatpush1.msra.mxu0 %v322
        %366 = vmatprep.subr.mxu0 0.0
        %367 = vmatpush1.msra.mxu0 %v323
        %368 = vmatprep.subr.mxu0 0.0
        %369 = vmatpush1.msra.mxu0 %v324
        %370 = vmatprep.subr.mxu0 0.0
        %371 = vmatpush1.msra.mxu0 %v325
        %372 = vmatprep.subr.mxu0 0.0
        %373 = vmatpush1.msra.mxu0 %v326
        %374 = vmatprep.subr.mxu0 0.0
        %375 = vmatpush1.msra.mxu0 %v327
        %376 = vmatprep.subr.mxu0 0.0
        %377 = vmatpush1.msra.mxu0 %v328
        %378 = vmatprep.subr.mxu0 0.0
        %379 = vmatpush1.msra.mxu0 %v329
        %380 = vmatprep.subr.mxu0 0.0
        %381 = vmatpush1.msra.mxu0 %v330
        %382 = vmatprep.subr.mxu0 0.0
        %383 = vmatpush1.msra.mxu0 %v331
        %384 = vmatprep.subr.mxu0 0.0
        %385 = vmatpush1.msra.mxu0 %v332
        %386 = vmatprep.subr.mxu0 0.0
        %387 = vmatpush1.msra.mxu0 %v333
        %388 = vmatprep.subr.mxu0 0.0
        %389 = vmatpush1.msra.mxu0 %v334
        %390 = vmatprep.subr.mxu0 0.0
        %391 = vmatpush1.msra.mxu0 %v335
        %392 = vmatprep.subr.mxu0 0.0
        %393 = vmatpush1.msra.mxu0 %v336
        %394 = vmatprep.subr.mxu0 0.0
        %395 = vmatpush1.msra.mxu0 %v337
        %396 = vmatprep.subr.mxu0 0.0
        %397 = vmatpush1.msra.mxu0 %v338
        %398 = vmatprep.subr.mxu0 0.0
        %399 = vmatpush1.msra.mxu0 %v339
        %400 = vmatprep.subr.mxu0 0.0
        %401 = vmatpush1.msra.mxu0 %v340
        %402 = vmatprep.subr.mxu0 0.0
        %403 = vmatpush1.msra.mxu0 %v341
        %404 = vmatprep.subr.mxu0 0.0
        %405 = vmatpush1.msra.mxu0 %v342
        %406 = vmatprep.subr.mxu0 0.0
        %407 = vmatpush1.msra.mxu0 %v343
        %408 = vmatprep.mubr.f32.mxu0 %v305
        %409 = vmatmul.mubr.f32.gmra.mrb[0].mxu0 %v304
        %v410 = vpop.f32.mrb[0].mxu0
        %v411 = vadd.f32 0.0, %v410
        %v412 = vpop.f32.mrb[0].mxu0
        %413 = vmatprep.mubr.f32.mxu0 %v307
        %414 = vmatmul.mubr.f32.gmra.mrb[0].mxu0 %v306
        %v415 = vpop.f32.mrb[0].mxu0
        %v416 = vadd.f32 0.0, %v415
        %v417 = vpop.f32.mrb[0].mxu0
        %418 = vmatprep.mubr.f32.mxu0 %v309
        %419 = vmatmul.mubr.f32.gmra.mrb[0].mxu0 %v308
        %v420 = vpop.f32.mrb[0].mxu0
        %v421 = vadd.f32 0.0, %v420
        %v422 = vpop.f32.mrb[0].mxu0
        %423 = vmatprep.mubr.f32.mxu0 %v311
        %424 = vmatmul.mubr.f32.gmra.mrb[0].mxu0 %v310
        %v425 = vpop.f32.mrb[0].mxu0
        %v426 = vadd.f32 0.0, %v425
        %v427 = vpop.f32.mrb[0].mxu0
        %428 = vdwg.mxu0
        %v429 = vld [vmem:[%s4] sm:$0xff]
        %v430 = vld [vmem:[%s4 + $0x8] sm:$0xff]
        %v431 = vld [vmem:[%s4 + $0x10] sm:$0xff]
        %v432 = vld [vmem:[%s4 + $0x18] sm:$0xff]
        %v433 = vld [vmem:[%s5] sm:$0xff]
        %v434 = vld [vmem:[%s5 + $0x8] sm:$0xff]
        %v435 = vld [vmem:[%s5 + $0x10] sm:$0xff]
        %v436 = vld [vmem:[%s5 + $0x18] sm:$0xff]
        %v437 = vld [vmem:[%s2] sm:$0x3]
        %v438 = vld [vmem:[%s3] sm:$0x3]
        %vm439 = vcmask 261120
        %v441 = vsel %vm439, %v437, 0
        %443 = vmatprep.subr.mxu0 0.0
        %444 = vmatpush1.msra.mxu0 %v411
        %445 = vmatprep.subr.mxu0 0.0
        %446 = vmatpush1.msra.mxu0 %v416
        %447 = vmatprep.subr.mxu0 0.0
        %448 = vmatpush1.msra.mxu0 %v421
        %449 = vmatprep.subr.mxu0 0.0
        %450 = vmatpush1.msra.mxu0 %v426
        %451 = vmatprep.subr.mxu0 0.0
        %452 = vmatpush1.msra.mxu0 0.0
        %453 = vmatprep.subr.mxu0 0.0
        %454 = vmatpush1.msra.mxu0 0.0
        %455 = vmatprep.subr.mxu0 0.0
        %456 = vmatpush1.msra.mxu0 0.0
        %457 = vmatprep.subr.mxu0 0.0
        %458 = vmatpush1.msra.mxu0 0.0
        %459 = vmatprep.subr.mxu0 0.0
        %460 = vmatpush1.msra.mxu0 0.0
        %461 = vmatprep.subr.mxu0 0.0
        %462 = vmatpush1.msra.mxu0 0.0
        %463 = vmatprep.subr.mxu0 0.0
        %464 = vmatpush1.msra.mxu0 0.0
        %465 = vmatprep.subr.mxu0 0.0
        %466 = vmatpush1.msra.mxu0 0.0
        %467 = vmatprep.subr.mxu0 0.0
        %468 = vmatpush1.msra.mxu0 0.0
        %469 = vmatprep.subr.mxu0 0.0
        %470 = vmatpush1.msra.mxu0 0.0
        %471 = vmatprep.subr.mxu0 0.0
        %472 = vmatpush1.msra.mxu0 0.0
        %473 = vmatprep.subr.mxu0 0.0
        %474 = vmatpush1.msra.mxu0 0.0
        %475 = vmatprep.subr.mxu0 0.0
        %476 = vmatpush1.msra.mxu0 0.0
        %477 = vmatprep.subr.mxu0 0.0
        %478 = vmatpush1.msra.mxu0 0.0
        %479 = vmatprep.subr.mxu0 0.0
        %480 = vmatpush1.msra.mxu0 0.0
        %481 = vmatprep.subr.mxu0 0.0
        %482 = vmatpush1.msra.mxu0 0.0
        %483 = vmatprep.subr.mxu0 0.0
        %484 = vmatpush1.msra.mxu0 0.0
        %485 = vmatprep.subr.mxu0 0.0
        %486 = vmatpush1.msra.mxu0 0.0
        %487 = vmatprep.subr.mxu0 0.0
        %488 = vmatpush1.msra.mxu0 0.0
        %489 = vmatprep.subr.mxu0 0.0
        %490 = vmatpush1.msra.mxu0 0.0
        %491 = vmatprep.subr.mxu0 0.0
        %492 = vmatpush1.msra.mxu0 0.0
        %493 = vmatprep.subr.mxu0 0.0
        %494 = vmatpush1.msra.mxu0 0.0
        %495 = vmatprep.subr.mxu0 0.0
        %496 = vmatpush1.msra.mxu0 0.0
        %497 = vmatprep.subr.mxu0 0.0
        %498 = vmatpush1.msra.mxu0 0.0
        %499 = vmatprep.subr.mxu0 0.0
        %500 = vmatpush1.msra.mxu0 0.0
        %501 = vmatprep.subr.mxu0 0.0
        %502 = vmatpush1.msra.mxu0 0.0
        %503 = vmatprep.subr.mxu0 0.0
        %504 = vmatpush1.msra.mxu0 0.0
        %505 = vmatprep.subr.mxu0 0.0
        %506 = vmatpush1.msra.mxu0 0.0
        %507 = vmatprep.mubr.f32.mxu0 0.0
        %508 = vmatmul.mubr.f32.gmra.mrb[0].mxu0 %v441
        %v509 = vpop.f32.mrb[0].mxu0
        %v510 = vadd.f32 %v438, %v509
        %v511 = vpop.f32.mrb[0].mxu0
        %512 = vdwg.mxu0
        %v513 = vmax.f32 %v510, 0.0
        %515 = vset.pattern.permute.xlu0 0
        %516 = vperm.xlu0 %515, %v429
        %v517 = vpop.permute.xlu0 %516
        %520 = vset.pattern.permute.xlu0 0
        %521 = vperm.xlu0 %520, %v430
        %v522 = vpop.permute.xlu0 %521
        %525 = vset.pattern.permute.xlu0 0
        %526 = vperm.xlu0 %525, %v431
        %v527 = vpop.permute.xlu0 %526
        %530 = vset.pattern.permute.xlu0 0
        %531 = vperm.xlu0 %530, %v432
        %v532 = vpop.permute.xlu0 %531
        %v534 = vlaneseq
        %v535 = vshrl.u32 %v534, 7
        %v536 = vsub.s32 0, %v535
        %v537 = vrot.slane %v513, %v536
        %v538 = vmul.f32 %v517, %v537
        %v539 = vmul.f32 %v522, %v537
        %v540 = vmul.f32 %v527, %v537
        %v541 = vmul.f32 %v532, %v537
        %543 = vset.pattern.permute.xlu0 0
        %544 = vperm.xlu0 %543, %v433
        %v545 = vpop.permute.xlu0 %544
        %548 = vset.pattern.permute.xlu0 0
        %549 = vperm.xlu0 %548, %v434
        %v550 = vpop.permute.xlu0 %549
        %553 = vset.pattern.permute.xlu0 0
        %554 = vperm.xlu0 %553, %v435
        %v555 = vpop.permute.xlu0 %554
        %558 = vset.pattern.permute.xlu0 0
        %559 = vperm.xlu0 %558, %v436
        %v560 = vpop.permute.xlu0 %559
        %v562 = vmul.f32 %v545, %v537
        %v563 = vmul.f32 %v550, %v537
        %v564 = vmul.f32 %v555, %v537
        %v565 = vmul.f32 %v560, %v537
        %566 = vset.pattern.permute.xlu0 1
        %567 = vperm.xlu0 %566, %v429
        %v568 = vpop.permute.xlu0 %567
        %570 = vset.pattern.permute.xlu0 1
        %571 = vperm.xlu0 %570, %v430
        %v572 = vpop.permute.xlu0 %571
        %574 = vset.pattern.permute.xlu0 1
        %575 = vperm.xlu0 %574, %v431
        %v576 = vpop.permute.xlu0 %575
        %578 = vset.pattern.permute.xlu0 1
        %579 = vperm.xlu0 %578, %v432
        %v580 = vpop.permute.xlu0 %579
        %v582 = vlaneseq
        %v583 = vshrl.u32 %v582, 7
        %v584 = vsub.s32 1, %v583
        %v585 = vrot.slane %v513, %v584
        %v586 = vmul.f32 %v568, %v585
        %v587 = vmul.f32 %v572, %v585
        %v588 = vmul.f32 %v576, %v585
        %v589 = vmul.f32 %v580, %v585
        %v590 = vadd.f32 %v538, %v586
        %v591 = vadd.f32 %v539, %v587
        %v592 = vadd.f32 %v540, %v588
        %v593 = vadd.f32 %v541, %v589
        %594 = vset.pattern.permute.xlu0 1
        %595 = vperm.xlu0 %594, %v433
        %v596 = vpop.permute.xlu0 %595
        %598 = vset.pattern.permute.xlu0 1
        %599 = vperm.xlu0 %598, %v434
        %v600 = vpop.permute.xlu0 %599
        %602 = vset.pattern.permute.xlu0 1
        %603 = vperm.xlu0 %602, %v435
        %v604 = vpop.permute.xlu0 %603
        %606 = vset.pattern.permute.xlu0 1
        %607 = vperm.xlu0 %606, %v436
        %v608 = vpop.permute.xlu0 %607
        %v610 = vmul.f32 %v596, %v585
        %v611 = vmul.f32 %v600, %v585
        %v612 = vmul.f32 %v604, %v585
        %v613 = vmul.f32 %v608, %v585
        %v614 = vadd.f32 %v562, %v610
        %v615 = vadd.f32 %v563, %v611
        %v616 = vadd.f32 %v564, %v612
        %v617 = vadd.f32 %v565, %v613
        %v618 = vxor.u32 %v590, 2147483648
        %v619 = vxor.u32 %v591, 2147483648
        %v620 = vxor.u32 %v592, 2147483648
        %v621 = vxor.u32 %v593, 2147483648
        %v622 = vmul.f32 %v618, 1.442695
        %v623 = vpow.pop %v622
        %v624 = vmul.f32 %v619, 1.442695
        %v625 = vpow.pop %v624
        %v626 = vmul.f32 %v620, 1.442695
        %v627 = vpow.pop %v626
        %v628 = vmul.f32 %v621, 1.442695
        %v629 = vpow.pop %v628
        %v630 = vadd.f32 %v623, 1.0
        %v631 = vadd.f32 %v625, 1.0
        %v632 = vadd.f32 %v627, 1.0
        %v633 = vadd.f32 %v629, 1.0
        %v634 = vrcp.pop %v630
        %v635 = vmul.f32 1.0, %v634
        %v636 = vrcp.pop %v631
        %v637 = vmul.f32 1.0, %v636
        %v638 = vrcp.pop %v632
        %v639 = vmul.f32 1.0, %v638
        %v640 = vrcp.pop %v633
        %v641 = vmul.f32 1.0, %v640
        %v642 = vxor.u32 %v614, 2147483648
        %v643 = vxor.u32 %v615, 2147483648
        %v644 = vxor.u32 %v616, 2147483648
        %v645 = vxor.u32 %v617, 2147483648
        %v646 = vmul.f32 %v642, 1.442695
        %v647 = vpow.pop %v646
        %v648 = vmul.f32 %v643, 1.442695
        %v649 = vpow.pop %v648
        %v650 = vmul.f32 %v644, 1.442695
        %v651 = vpow.pop %v650
        %v652 = vmul.f32 %v645, 1.442695
        %v653 = vpow.pop %v652
        %v654 = vadd.f32 %v647, 1.0
        %v655 = vadd.f32 %v649, 1.0
        %v656 = vadd.f32 %v651, 1.0
        %v657 = vadd.f32 %v653, 1.0
        %v658 = vrcp.pop %v654
        %v659 = vmul.f32 1.0, %v658
        %v660 = vrcp.pop %v655
        %v661 = vmul.f32 1.0, %v660
        %v662 = vrcp.pop %v656
        %v663 = vmul.f32 1.0, %v662
        %v664 = vrcp.pop %v657
        %v665 = vmul.f32 1.0, %v664
        %v666 = vld [vmem:[%s6] sm:$0xff]
        %v667 = vld [vmem:[%s6 + $0x8] sm:$0xff]
        %v668 = vld [vmem:[%s6 + $0x10] sm:$0xff]
        %v669 = vld [vmem:[%s6 + $0x18] sm:$0xff]
        %vm670 = vcmask 130048
        %v672 = vsel %vm670, %v635, 0
        %v675 = vsel %vm670, %v637, 0
        %v678 = vsel %vm670, %v639, 0
        %v681 = vsel %vm670, %v641, 0
        %683 = vmatprep.subr.mxu0 %v667
        %684 = vmatpush1.msra.mxu0 %v666
        %685 = vmatprep.subr.mxu0 %v669
        %686 = vmatpush1.msra.mxu0 %v668
        %687 = vmatprep.subr.mxu0 0.0
        %688 = vmatpush1.msra.mxu0 0.0
        %689 = vmatprep.subr.mxu0 0.0
        %690 = vmatpush1.msra.mxu0 0.0
        %691 = vmatprep.subr.mxu0 0.0
        %692 = vmatpush1.msra.mxu0 0.0
        %693 = vmatprep.subr.mxu0 0.0
        %694 = vmatpush1.msra.mxu0 0.0
        %695 = vmatprep.subr.mxu0 0.0
        %696 = vmatpush1.msra.mxu0 0.0
        %697 = vmatprep.subr.mxu0 0.0
        %698 = vmatpush1.msra.mxu0 0.0
        %699 = vmatprep.subr.mxu0 0.0
        %700 = vmatpush1.msra.mxu0 0.0
        %701 = vmatprep.subr.mxu0 0.0
        %702 = vmatpush1.msra.mxu0 0.0
        %703 = vmatprep.subr.mxu0 0.0
        %704 = vmatpush1.msra.mxu0 0.0
        %705 = vmatprep.subr.mxu0 0.0
        %706 = vmatpush1.msra.mxu0 0.0
        %707 = vmatprep.subr.mxu0 0.0
        %708 = vmatpush1.msra.mxu0 0.0
        %709 = vmatprep.subr.mxu0 0.0
        %710 = vmatpush1.msra.mxu0 0.0
        %711 = vmatprep.subr.mxu0 0.0
        %712 = vmatpush1.msra.mxu0 0.0
        %713 = vmatprep.subr.mxu0 0.0
        %714 = vmatpush1.msra.mxu0 0.0
        %715 = vmatprep.subr.mxu0 0.0
        %716 = vmatpush1.msra.mxu0 0.0
        %717 = vmatprep.subr.mxu0 0.0
        %718 = vmatpush1.msra.mxu0 0.0
        %719 = vmatprep.subr.mxu0 0.0
        %720 = vmatpush1.msra.mxu0 0.0
        %721 = vmatprep.subr.mxu0 0.0
        %722 = vmatpush1.msra.mxu0 0.0
        %723 = vmatprep.subr.mxu0 0.0
        %724 = vmatpush1.msra.mxu0 0.0
        %725 = vmatprep.subr.mxu0 0.0
        %726 = vmatpush1.msra.mxu0 0.0
        %727 = vmatprep.subr.mxu0 0.0
        %728 = vmatpush1.msra.mxu0 0.0
        %729 = vmatprep.subr.mxu0 0.0
        %730 = vmatpush1.msra.mxu0 0.0
        %731 = vmatprep.subr.mxu0 0.0
        %732 = vmatpush1.msra.mxu0 0.0
        %733 = vmatprep.subr.mxu0 0.0
        %734 = vmatpush1.msra.mxu0 0.0
        %735 = vmatprep.subr.mxu0 0.0
        %736 = vmatpush1.msra.mxu0 0.0
        %737 = vmatprep.subr.mxu0 0.0
        %738 = vmatpush1.msra.mxu0 0.0
        %739 = vmatprep.subr.mxu0 0.0
        %740 = vmatpush1.msra.mxu0 0.0
        %741 = vmatprep.subr.mxu0 0.0
        %742 = vmatpush1.msra.mxu0 0.0
        %743 = vmatprep.subr.mxu0 0.0
        %744 = vmatpush1.msra.mxu0 0.0
        %745 = vmatprep.subr.mxu0 0.0
        %746 = vmatpush1.msra.mxu0 0.0
        %747 = vmatprep.mubr.f32.mxu0 0.0
        %748 = vmatmul.mubr.f32.gmra.mrb[0].mxu0 %v672
        %v749 = vpop.f32.mrb[0].mxu0
        %v750 = vadd.f32 0.0, %v749
        %v751 = vpop.f32.mrb[0].mxu0
        %v752 = vadd.f32 0.0, %v751
        %753 = vmatprep.mubr.f32.mxu0 0.0
        %754 = vmatmul.mubr.f32.gmra.mrb[0].mxu0 %v675
        %v755 = vpop.f32.mrb[0].mxu0
        %v756 = vadd.f32 0.0, %v755
        %v757 = vpop.f32.mrb[0].mxu0
        %v758 = vadd.f32 0.0, %v757
        %759 = vmatprep.mubr.f32.mxu0 0.0
        %760 = vmatmul.mubr.f32.gmra.mrb[0].mxu0 %v678
        %v761 = vpop.f32.mrb[0].mxu0
        %v762 = vadd.f32 0.0, %v761
        %v763 = vpop.f32.mrb[0].mxu0
        %v764 = vadd.f32 0.0, %v763
        %765 = vmatprep.mubr.f32.mxu0 0.0
        %766 = vmatmul.mubr.f32.gmra.mrb[0].mxu0 %v681
        %v767 = vpop.f32.mrb[0].mxu0
        %v768 = vadd.f32 0.0, %v767
        %v769 = vpop.f32.mrb[0].mxu0
        %v770 = vadd.f32 0.0, %v769
        %771 = vdwg.mxu0
        %v772 = vld [vmem:[%s7] sm:$0xff]
        %v773 = vld [vmem:[%s7 + $0x8] sm:$0xff]
        %v774 = vld [vmem:[%s7 + $0x10] sm:$0xff]
        %v775 = vld [vmem:[%s7 + $0x18] sm:$0xff]
        %780 = vrot.lane.b32.xlu0 %v659, 112
        %v781 = vpop.permute.xlu0 %780
        %782 = vrot.lane.b32.xlu0 %v661, 112
        %v783 = vpop.permute.xlu0 %782
        %784 = vrot.lane.b32.xlu0 %v663, 112
        %v785 = vpop.permute.xlu0 %784
        %786 = vrot.lane.b32.xlu0 %v665, 112
        %v787 = vpop.permute.xlu0 %786
        %v788 = vsel %vm670, %v781, 0
        %v790 = vsel %vm670, %v783, 0
        %v792 = vsel %vm670, %v785, 0
        %v794 = vsel %vm670, %v787, 0
        %796 = vmatprep.subr.mxu0 %v773
        %797 = vmatpush1.msra.mxu0 %v772
        %798 = vmatprep.subr.mxu0 %v775
        %799 = vmatpush1.msra.mxu0 %v774
        %800 = vmatprep.subr.mxu0 0.0
        %801 = vmatpush1.msra.mxu0 0.0
        %802 = vmatprep.subr.mxu0 0.0
        %803 = vmatpush1.msra.mxu0 0.0
        %804 = vmatprep.subr.mxu0 0.0
        %805 = vmatpush1.msra.mxu0 0.0
        %806 = vmatprep.subr.mxu0 0.0
        %807 = vmatpush1.msra.mxu0 0.0
        %808 = vmatprep.subr.mxu0 0.0
        %809 = vmatpush1.msra.mxu0 0.0
        %810 = vmatprep.subr.mxu0 0.0
        %811 = vmatpush1.msra.mxu0 0.0
        %812 = vmatprep.subr.mxu0 0.0
        %813 = vmatpush1.msra.mxu0 0.0
        %814 = vmatprep.subr.mxu0 0.0
        %815 = vmatpush1.msra.mxu0 0.0
        %816 = vmatprep.subr.mxu0 0.0
        %817 = vmatpush1.msra.mxu0 0.0
        %818 = vmatprep.subr.mxu0 0.0
        %819 = vmatpush1.msra.mxu0 0.0
        %820 = vmatprep.subr.mxu0 0.0
        %821 = vmatpush1.msra.mxu0 0.0
        %822 = vmatprep.subr.mxu0 0.0
        %823 = vmatpush1.msra.mxu0 0.0
        %824 = vmatprep.subr.mxu0 0.0
        %825 = vmatpush1.msra.mxu0 0.0
        %826 = vmatprep.subr.mxu0 0.0
        %827 = vmatpush1.msra.mxu0 0.0
        %828 = vmatprep.subr.mxu0 0.0
        %829 = vmatpush1.msra.mxu0 0.0
        %830 = vmatprep.subr.mxu0 0.0
        %831 = vmatpush1.msra.mxu0 0.0
        %832 = vmatprep.subr.mxu0 0.0
        %833 = vmatpush1.msra.mxu0 0.0
        %834 = vmatprep.subr.mxu0 0.0
        %835 = vmatpush1.msra.mxu0 0.0
        %836 = vmatprep.subr.mxu0 0.0
        %837 = vmatpush1.msra.mxu0 0.0
        %838 = vmatprep.subr.mxu0 0.0
        %839 = vmatpush1.msra.mxu0 0.0
        %840 = vmatprep.subr.mxu0 0.0
        %841 = vmatpush1.msra.mxu0 0.0
        %842 = vmatprep.subr.mxu0 0.0
        %843 = vmatpush1.msra.mxu0 0.0
        %844 = vmatprep.subr.mxu0 0.0
        %845 = vmatpush1.msra.mxu0 0.0
        %846 = vmatprep.subr.mxu0 0.0
        %847 = vmatpush1.msra.mxu0 0.0
        %848 = vmatprep.subr.mxu0 0.0
        %849 = vmatpush1.msra.mxu0 0.0
        %850 = vmatprep.subr.mxu0 0.0
        %851 = vmatpush1.msra.mxu0 0.0
        %852 = vmatprep.subr.mxu0 0.0
        %853 = vmatpush1.msra.mxu0 0.0
        %854 = vmatprep.subr.mxu0 0.0
        %855 = vmatpush1.msra.mxu0 0.0
        %856 = vmatprep.subr.mxu0 0.0
        %857 = vmatpush1.msra.mxu0 0.0
        %858 = vmatprep.subr.mxu0 0.0
        %859 = vmatpush1.msra.mxu0 0.0
        %860 = vmatprep.mubr.f32.mxu0 0.0
        %861 = vmatmul.mubr.f32.gmra.mrb[0].mxu0 %v788
        %v862 = vpop.f32.mrb[0].mxu0
        %v863 = vadd.f32 0.0, %v862
        %v864 = vpop.f32.mrb[0].mxu0
        %v865 = vadd.f32 0.0, %v864
        %866 = vmatprep.mubr.f32.mxu0 0.0
        %867 = vmatmul.mubr.f32.gmra.mrb[0].mxu0 %v790
        %v868 = vpop.f32.mrb[0].mxu0
        %v869 = vadd.f32 0.0, %v868
        %v870 = vpop.f32.mrb[0].mxu0
        %v871 = vadd.f32 0.0, %v870
        %872 = vmatprep.mubr.f32.mxu0 0.0
        %873 = vmatmul.mubr.f32.gmra.mrb[0].mxu0 %v792
        %v874 = vpop.f32.mrb[0].mxu0
        %v875 = vadd.f32 0.0, %v874
        %v876 = vpop.f32.mrb[0].mxu0
        %v877 = vadd.f32 0.0, %v876
        %878 = vmatprep.mubr.f32.mxu0 0.0
        %879 = vmatmul.mubr.f32.gmra.mrb[0].mxu0 %v794
        %v880 = vpop.f32.mrb[0].mxu0
        %v881 = vadd.f32 0.0, %v880
        %v882 = vpop.f32.mrb[0].mxu0
        %v883 = vadd.f32 0.0, %v882
        %884 = vdwg.mxu0
        %v885 = vmul.f32 %v304, %v750
        %v886 = vmul.f32 %v305, %v752
        %v887 = vmul.f32 %v306, %v756
        %v888 = vmul.f32 %v307, %v758
        %v889 = vmul.f32 %v308, %v762
        %v890 = vmul.f32 %v309, %v764
        %v891 = vmul.f32 %v310, %v768
        %v892 = vmul.f32 %v311, %v770
        %v893 = vmul.f32 %v885, %v863
        %v894 = vmul.f32 %v886, %v865
        %v895 = vmul.f32 %v887, %v869
        %v896 = vmul.f32 %v888, %v871
        %v897 = vmul.f32 %v889, %v875
        %v898 = vmul.f32 %v890, %v877
        %v899 = vmul.f32 %v891, %v881
        %v900 = vmul.f32 %v892, %v883
        %901 = vst [vmem:[%s298] sm:$0xff] %v893
        %902 = vst [vmem:[%s298 + $0x8] sm:$0xff] %v894
        %903 = vst [vmem:[%s298 + $0x10] sm:$0xff] %v895
        %904 = vst [vmem:[%s298 + $0x18] sm:$0xff] %v896
        %905 = vst [vmem:[%s298 + $0x20] sm:$0xff] %v897
        %906 = vst [vmem:[%s298 + $0x28] sm:$0xff] %v898
        %907 = vst [vmem:[%s298 + $0x30] sm:$0xff] %v899
        %908 = vst [vmem:[%s298 + $0x38] sm:$0xff] %v900
        %s909 = sand.u32 %s203, 1
        %s910 = scalar_lea.sflag [#allocation3], %s909
        %s911 = sand.u32 %s203, 1
        %s912 = smul.addr %s911, 64
        %s913 = scalar_lea.vmem [#allocation2], %s912
        // Predicated region
        $region53: #{tpu_custom_call.1} parent=51 // pred_check
          %p914 = pneg %p213
        $region54: #{tpu_custom_call.1} parent=51 // pred_check_branch
          %916 = sbr.rel (%p914) target = $region56
        $region55: #{tpu_custom_call.1} parent=51 // pred_region
          %s918 = ssub.s32 1024, 1024
          %919 = vsyncadd %s910, %s918
          %s920 = smul.addr %s22, 8
          %s921 = smul.addr %s920, 128
          %s922 = scalar_lea.hbm %s8, %s921
          %s923 = sshll.u32 %s913, 4
          %s924 = int_to_ptr.vmem [resolvable:$true] %s923
          %929 = dma.vmem_to_hbm [thread:$0]  %s924, 1024, %s922, %s910, 256, 256, 16
        $region56: #{tpu_custom_call.1} parent=51 // pred_fallthru
          _
      $region52: #{tpu_custom_call.1} parent=5 // pred_fallthru
        _
      %p930 = scmp.le.s32.totalorder 2, %s17
      // Predicated region
      $region57: #{tpu_custom_call.1} parent=5 // pred_check
        %p931 = pneg %p930
      $region58: #{tpu_custom_call.1} parent=5 // pred_check_branch
        %933 = sbr.rel (%p931) target = $region60
      $region59: #{tpu_custom_call.1} parent=5 // pred_region
        %s934 = ssub.s32 %s17, 2
        // Predicated region
        $region61: #{tpu_custom_call.1} parent=59 // pred_check
          %p935 = pneg %p219
        $region62: #{tpu_custom_call.1} parent=59 // pred_check_branch
          %937 = sbr.rel (%p935) target = $region64
        $region63: #{tpu_custom_call.1} parent=59 // pred_region
          %s938 = sand.u32 %s204, 1
          %s939 = scalar_lea.sflag [#allocation3], %s938
          %s940 = sand.u32 %s204, 1
          %s941 = smul.addr %s940, 64
          %s942 = scalar_lea.vmem [#allocation2], %s941
          %943 = dma.done %s939, 1024
        $region64: #{tpu_custom_call.1} parent=59 // pred_fallthru
          _
      $region60: #{tpu_custom_call.1} parent=5 // pred_fallthru
        _
    $region6: #{tpu_custom_call.1} parent=1 // loop_footer
      %s21 = sadd.s32 1, %s17
    $region7: #{tpu_custom_call.1} parent=1 // loop_footer_branch
      %16 = sbr.rel target = $region3
    $region8: #{tpu_custom_call.1} parent=1 // loop_exit
      _
    %944 = vsyncpa [#allocation3], 1
    %s945 = scalar_lea.sflag [#allocation3], 1
    %946 = vsyncpa %s945, 1

</llo_original>
